<compile_context>
chip_gen: v6e
topology: v6e:2x2x1
jax: 0.10.0
libtpu: 0.0.40
codegen_flags: <defaults>
</compile_context>

<pallas_src>
import functools

import jax
import jax.numpy as jnp
from jax.experimental import pallas as pl
from jax.experimental.pallas import tpu as pltpu

EPS = 1e-5
LANE = 128
SUBLANE = 16          # bf16 sublane packing -> pad B to a multiple of 16


def _bn_relu(h, gamma, beta, inv_n, row_mask):
    """Training-mode BatchNorm1d + affine + ReLU fused into one scale/shift.

    `h` is the f32 MXU accumulator output.  Padded batch rows of `h` are
    exactly zero (zero input rows, pre-BN bias elided), so the raw sums are
    already over the real rows only; `inv_n` is 1/real_batch.  Padded rows are
    re-zeroed after the shift+ReLU so the shift does not leak into the next
    layer's statistics.
    """
    sum_h = jnp.sum(h, axis=0, keepdims=True)
    sum_h2 = jnp.sum(h * h, axis=0, keepdims=True)
    mean = sum_h * inv_n
    # One-pass biased variance, clamped: E[h^2]-mean^2 can be slightly
    # negative in f32 and rsqrt(var+eps) would then produce NaN.
    var = jnp.maximum(sum_h2 * inv_n - mean * mean, 0.0)
    s = gamma * jax.lax.rsqrt(var + EPS)          # per-feature scale (1,F)
    t = beta - mean * s                           # per-feature shift (1,F)
    out = jnp.maximum(h * s + t, 0.0)
    if row_mask is not None:
        out = out * row_mask
    return out


def decoder_kernel(z_ref, w1_ref, w2_ref, w3_ref, w4_ref, pvec_ref, out_ref,
                   *, real_b):
    b_pad = z_ref.shape[0]
    inv_n = 1.0 / real_b
    d1 = w1_ref.shape[1]   # h2
    d2 = w2_ref.shape[1]   # h1
    d3 = w3_ref.shape[1]   # h0
    d4 = w4_ref.shape[1]   # input_dim

    if b_pad != real_b:
        row_mask = (jax.lax.broadcasted_iota(jnp.int32, (b_pad, 1), 0)
                    < real_b).astype(jnp.float32)
    else:
        row_mask = None

    # bf16 MXU operands, f32 accumulation, f32 BN math.
    z = z_ref[...]                                 # already bf16

    # Layer 1: Linear (pre-BN bias elided; cancels in BN) -> BN -> ReLU
    h = jnp.dot(z, w1_ref[...], preferred_element_type=jnp.float32)
    h = _bn_relu(h, pvec_ref[0:1, :d1], pvec_ref[1:2, :d1], inv_n, row_mask)

    # Layer 2
    h = jnp.dot(h.astype(jnp.bfloat16), w2_ref[...],
                preferred_element_type=jnp.float32)
    h = _bn_relu(h, pvec_ref[2:3, :d2], pvec_ref[3:4, :d2], inv_n, row_mask)

    # Layer 3
    h = jnp.dot(h.astype(jnp.bfloat16), w3_ref[...],
                preferred_element_type=jnp.float32)
    h = _bn_relu(h, pvec_ref[4:5, :d3], pvec_ref[5:6, :d3], inv_n, row_mask)

    # Layer 4: plain Linear (bias kept)
    out_ref[...] = (jnp.dot(h.astype(jnp.bfloat16), w4_ref[...],
                            preferred_element_type=jnp.float32)
                    + pvec_ref[6:7, :d4])


def _pack_vectors(params, lane_width):
    """Pack (g1,bt1,g2,bt2,g3,bt3,b4) into one (8, lane_width) f32 array."""
    rows = []
    for name in ("g1", "bt1", "g2", "bt2", "g3", "bt3", "b4"):
        v = jnp.reshape(params[name], (-1,)).astype(jnp.float32)
        rows.append(jnp.pad(v, (0, lane_width - v.shape[0])))
    rows.append(jnp.zeros((lane_width,), jnp.float32))   # pad to 8 sublanes
    return jnp.stack(rows, axis=0)


def decoder_forward(z, params):
    """z: (B, latent_dim) float32.  params: dict with w1..w4 (in,out), b1..b4,
    g1..g3, bt1..bt3 (all (1,out)).  b1/b2/b3 are unused in the forward (they
    cancel in training-mode BatchNorm) but kept in the dict for parity."""
    B, latent = z.shape
    h2 = params["w1"].shape[1]
    h1 = params["w2"].shape[1]
    h0 = params["w3"].shape[1]
    out_dim = params["w4"].shape[1]

    # Pad batch to the bf16 sublane multiple -> unmasked vregs / MXU pushes.
    B_pad = pl.cdiv(B, SUBLANE) * SUBLANE
    z_bf16 = z.astype(jnp.bfloat16)
    if B_pad != B:
        z_bf16 = jnp.pad(z_bf16, ((0, B_pad - B), (0, 0)))

    lane_width = max(LANE, pl.cdiv(max(h2, h1, h0, out_dim), LANE) * LANE)
    pvec = _pack_vectors(params, lane_width)

    w1 = params["w1"].astype(jnp.bfloat16)
    w2 = params["w2"].astype(jnp.bfloat16)
    w3 = params["w3"].astype(jnp.bfloat16)
    w4 = params["w4"].astype(jnp.bfloat16)

    args = (z_bf16, w1, w2, w3, w4, pvec)
    in_specs = [pl.BlockSpec(memory_space=pltpu.MemorySpace.VMEM)
                for _ in args]

    # ---- explicit VMEM budget (everything resident in this gridless call) ---
    def lane_pad(f):
        return pl.cdiv(f, LANE) * LANE

    max_f = max(lane_pad(d) for d in (latent, h2, h1, h0, out_dim))
    act_bytes = B_pad * max_f * (4 + 2)            # f32 act + bf16 copy
    weight_bytes = 2 * sum(int(w.size) for w in (w1, w2, w3, w4)) * 2
    vmem_bytes = 6 * act_bytes + weight_bytes + 2 * int(pvec.size) * 4
    vmem_bytes = int(min(max(vmem_bytes + (1 << 20), 8 << 20), 64 << 20))

    flops = 2 * B_pad * (latent * h2 + h2 * h1 + h1 * h0 + h0 * out_dim)
    bytes_accessed = (2 * B_pad * lane_pad(latent)        # z (bf16, lane-padded)
                      + 4 * B_pad * lane_pad(out_dim)     # out (f32)
                      + 2 * sum(int(w.size) for w in (w1, w2, w3, w4))
                      + 4 * int(pvec.size))
    cost = pl.CostEstimate(flops=flops,
                           transcendentals=h2 + h1 + h0,
                           bytes_accessed=bytes_accessed)

    out_padded = pl.pallas_call(
        functools.partial(decoder_kernel, real_b=B),
        out_shape=jax.ShapeDtypeStruct((B_pad, out_dim), jnp.float32),
        in_specs=in_specs,
        out_specs=pl.BlockSpec(memory_space=pltpu.MemorySpace.VMEM),
        compiler_params=pltpu.CompilerParams(vmem_limit_bytes=vmem_bytes),
        cost_estimate=cost,
    )(*args)

    return out_padded[:B] if B_pad != B else out_padded


def init_params(key, latent_dim, input_dim, hidden_dim):
    """hidden_dim = [h0, h1, h2] as in the PyTorch module."""
    h0, h1, h2 = hidden_dim
    dims = [(latent_dim, h2), (h2, h1), (h1, h0), (h0, input_dim)]
    params = {}
    keys = jax.random.split(key, 2 * len(dims))
    for i, (din, dout) in enumerate(dims):
        kw, kb = keys[2 * i], keys[2 * i + 1]
        bound = 1.0 / jnp.sqrt(din)
        params[f"w{i+1}"] = jax.random.uniform(
            kw, (din, dout), jnp.float32, -bound, bound)
        params[f"b{i+1}"] = jax.random.uniform(
            kb, (1, dout), jnp.float32, -bound, bound)
    # BatchNorm affine params (default init gamma=1, beta=0)
    for i, dout in enumerate([h2, h1, h0]):
        params[f"g{i+1}"] = jnp.ones((1, dout), jnp.float32)
        params[f"bt{i+1}"] = jnp.zeros((1, dout), jnp.float32)
    return params


def decoder_reference(z, params):
    """Pure-JAX f32 reference mirroring the PyTorch training-mode forward
    exactly (including the pre-BN biases and two-pass variance)."""
    def bn_relu(h, g, bt):
        mean = jnp.mean(h, axis=0, keepdims=True)
        var = jnp.mean((h - mean) ** 2, axis=0, keepdims=True)
        return jnp.maximum((h - mean) / jnp.sqrt(var + EPS) * g + bt, 0.0)

    h = z @ params["w1"] + params["b1"]
    h = bn_relu(h, params["g1"], params["bt1"])
    h = h @ params["w2"] + params["b2"]
    h = bn_relu(h, params["g2"], params["bt2"])
    h = h @ params["w3"] + params["b3"]
    h = bn_relu(h, params["g3"], params["bt3"])
    return h @ params["w4"] + params["b4"]


if __name__ == "__main__":
    latent_dim = 16
    input_dim = 128
    hidden_dim = [64, 48, 32]   # [h0, h1, h2]
    batch = 8

    key = jax.random.PRNGKey(0)
    kz, kp = jax.random.split(key)
    z = jax.random.normal(kz, (batch, latent_dim), jnp.float32)
    params = init_params(kp, latent_dim, input_dim, hidden_dim)

    out = decoder_forward(z, params)
    out = jax.block_until_ready(out)

    ref = decoder_reference(z, params)
    assert out.shape == (batch, input_dim)
    # bf16 MXU operands (f32 accumulation + BN renormalization keeps the error
    # at the ~1e-2 level) -> loosened tolerance vs the f32 reference.
    assert jnp.allclose(out, ref, atol=1e-1, rtol=1e-2), "mismatch vs reference"

    print("KERNEL_OK")
</pallas_src>

<mosaic_0001>
module attributes {stable_mosaic.version = 11 : i64} {
  func.func @decoder_kernel(%arg0: memref<16x16xbf16, #tpu.memory_space<vmem>>, %arg1: memref<16x32xbf16, #tpu.memory_space<vmem>>, %arg2: memref<32x48xbf16, #tpu.memory_space<vmem>>, %arg3: memref<48x64xbf16, #tpu.memory_space<vmem>>, %arg4: memref<64x128xbf16, #tpu.memory_space<vmem>>, %arg5: memref<8x128xf32, #tpu.memory_space<vmem>>, %arg6: memref<16x128xf32, #tpu.memory_space<vmem>>) attributes {dimension_semantics = [], scalar_prefetch = 0 : i64, scratch_operands = 0 : i64, tpu.core_type = #tpu.core_type<tc>} {
    %0 = tpu.iota {dimensions = array<i32: 0>} : vector<16x1xi32>
    %c8_i32 = arith.constant 8 : i32
    %1 = vector.broadcast %c8_i32 : i32 to vector<16x1xi32>
    %2 = arith.cmpi slt, %0, %1 : vector<16x1xi32>
    %3 = arith.extui %2 : vector<16x1xi1> to vector<16x1xi32>
    %4 = arith.sitofp %3 : vector<16x1xi32> to vector<16x1xf32>
    %c0 = arith.constant 0 : index
    %c0_0 = arith.constant 0 : index
    %5 = vector.load %arg0[%c0, %c0_0] : memref<16x16xbf16, #tpu.memory_space<vmem>>, vector<16x16xbf16>
    %c0_1 = arith.constant 0 : index
    %c0_2 = arith.constant 0 : index
    %6 = vector.load %arg1[%c0_1, %c0_2] : memref<16x32xbf16, #tpu.memory_space<vmem>>, vector<16x32xbf16>
    %cst = arith.constant dense<0.000000e+00> : vector<16x32xf32>
    %7 = tpu.matmul %5, %6, %cst {dimension_numbers = #tpu.dot_dimension_numbers<[1], [0], [0], [1], [0, 0, 1, 1], [], []>} : vector<16x16xbf16>, vector<16x32xbf16>, vector<16x32xf32> -> vector<16x32xf32>
    %c0_3 = arith.constant 0 : index
    %c0_4 = arith.constant 0 : index
    %8 = vector.load %arg5[%c0_3, %c0_4] : memref<8x128xf32, #tpu.memory_space<vmem>>, vector<1x32xf32>
    %c1 = arith.constant 1 : index
    %c0_5 = arith.constant 0 : index
    %9 = vector.load %arg5[%c1, %c0_5] : memref<8x128xf32, #tpu.memory_space<vmem>>, vector<1x32xf32>
    %cst_6 = arith.constant dense<0.000000e+00> : vector<32xf32>
    %10 = vector.multi_reduction <add>, %7, %cst_6 [0] : vector<16x32xf32> to vector<32xf32>
    %11 = vector.shape_cast %10 : vector<32xf32> to vector<1x32xf32>
    %12 = arith.mulf %7, %7 : vector<16x32xf32>
    %cst_7 = arith.constant dense<0.000000e+00> : vector<32xf32>
    %13 = vector.multi_reduction <add>, %12, %cst_7 [0] : vector<16x32xf32> to vector<32xf32>
    %14 = vector.shape_cast %13 : vector<32xf32> to vector<1x32xf32>
    %cst_8 = arith.constant 1.250000e-01 : f32
    %15 = vector.broadcast %cst_8 : f32 to vector<1x32xf32>
    %16 = arith.mulf %11, %15 : vector<1x32xf32>
    %cst_9 = arith.constant 1.250000e-01 : f32
    %17 = vector.broadcast %cst_9 : f32 to vector<1x32xf32>
    %18 = arith.mulf %14, %17 : vector<1x32xf32>
    %19 = arith.mulf %16, %16 : vector<1x32xf32>
    %20 = arith.subf %18, %19 : vector<1x32xf32>
    %cst_10 = arith.constant 0.000000e+00 : f32
    %21 = vector.broadcast %cst_10 : f32 to vector<1x32xf32>
    %22 = arith.maximumf %20, %21 : vector<1x32xf32>
    %cst_11 = arith.constant 9.99999974E-6 : f32
    %23 = vector.broadcast %cst_11 : f32 to vector<1x32xf32>
    %24 = arith.addf %22, %23 : vector<1x32xf32>
    %25 = math.rsqrt %24 : vector<1x32xf32>
    %26 = arith.mulf %8, %25 : vector<1x32xf32>
    %27 = arith.mulf %16, %26 : vector<1x32xf32>
    %28 = arith.subf %9, %27 : vector<1x32xf32>
    %29 = vector.broadcast %26 : vector<1x32xf32> to vector<16x32xf32>
    %30 = arith.mulf %7, %29 : vector<16x32xf32>
    %31 = vector.broadcast %28 : vector<1x32xf32> to vector<16x32xf32>
    %32 = arith.addf %30, %31 : vector<16x32xf32>
    %cst_12 = arith.constant 0.000000e+00 : f32
    %33 = vector.broadcast %cst_12 : f32 to vector<16x32xf32>
    %34 = arith.maximumf %32, %33 : vector<16x32xf32>
    %35 = vector.broadcast %4 : vector<16x1xf32> to vector<16x32xf32>
    %36 = arith.mulf %34, %35 : vector<16x32xf32>
    %37 = arith.truncf %36 : vector<16x32xf32> to vector<16x32xbf16>
    %c0_13 = arith.constant 0 : index
    %c0_14 = arith.constant 0 : index
    %38 = vector.load %arg2[%c0_13, %c0_14] : memref<32x48xbf16, #tpu.memory_space<vmem>>, vector<32x48xbf16>
    %cst_15 = arith.constant dense<0.000000e+00> : vector<16x48xf32>
    %39 = tpu.matmul %37, %38, %cst_15 {dimension_numbers = #tpu.dot_dimension_numbers<[1], [0], [0], [1], [0, 0, 1, 1], [], []>} : vector<16x32xbf16>, vector<32x48xbf16>, vector<16x48xf32> -> vector<16x48xf32>
    %c2 = arith.constant 2 : index
    %c0_16 = arith.constant 0 : index
    %40 = vector.load %arg5[%c2, %c0_16] : memref<8x128xf32, #tpu.memory_space<vmem>>, vector<1x48xf32>
    %c3 = arith.constant 3 : index
    %c0_17 = arith.constant 0 : index
    %41 = vector.load %arg5[%c3, %c0_17] : memref<8x128xf32, #tpu.memory_space<vmem>>, vector<1x48xf32>
    %cst_18 = arith.constant dense<0.000000e+00> : vector<48xf32>
    %42 = vector.multi_reduction <add>, %39, %cst_18 [0] : vector<16x48xf32> to vector<48xf32>
    %43 = vector.shape_cast %42 : vector<48xf32> to vector<1x48xf32>
    %44 = arith.mulf %39, %39 : vector<16x48xf32>
    %cst_19 = arith.constant dense<0.000000e+00> : vector<48xf32>
    %45 = vector.multi_reduction <add>, %44, %cst_19 [0] : vector<16x48xf32> to vector<48xf32>
    %46 = vector.shape_cast %45 : vector<48xf32> to vector<1x48xf32>
    %cst_20 = arith.constant 1.250000e-01 : f32
    %47 = vector.broadcast %cst_20 : f32 to vector<1x48xf32>
    %48 = arith.mulf %43, %47 : vector<1x48xf32>
    %cst_21 = arith.constant 1.250000e-01 : f32
    %49 = vector.broadcast %cst_21 : f32 to vector<1x48xf32>
    %50 = arith.mulf %46, %49 : vector<1x48xf32>
    %51 = arith.mulf %48, %48 : vector<1x48xf32>
    %52 = arith.subf %50, %51 : vector<1x48xf32>
    %cst_22 = arith.constant 0.000000e+00 : f32
    %53 = vector.broadcast %cst_22 : f32 to vector<1x48xf32>
    %54 = arith.maximumf %52, %53 : vector<1x48xf32>
    %cst_23 = arith.constant 9.99999974E-6 : f32
    %55 = vector.broadcast %cst_23 : f32 to vector<1x48xf32>
    %56 = arith.addf %54, %55 : vector<1x48xf32>
    %57 = math.rsqrt %56 : vector<1x48xf32>
    %58 = arith.mulf %40, %57 : vector<1x48xf32>
    %59 = arith.mulf %48, %58 : vector<1x48xf32>
    %60 = arith.subf %41, %59 : vector<1x48xf32>
    %61 = vector.broadcast %58 : vector<1x48xf32> to vector<16x48xf32>
    %62 = arith.mulf %39, %61 : vector<16x48xf32>
    %63 = vector.broadcast %60 : vector<1x48xf32> to vector<16x48xf32>
    %64 = arith.addf %62, %63 : vector<16x48xf32>
    %cst_24 = arith.constant 0.000000e+00 : f32
    %65 = vector.broadcast %cst_24 : f32 to vector<16x48xf32>
    %66 = arith.maximumf %64, %65 : vector<16x48xf32>
    %67 = vector.broadcast %4 : vector<16x1xf32> to vector<16x48xf32>
    %68 = arith.mulf %66, %67 : vector<16x48xf32>
    %69 = arith.truncf %68 : vector<16x48xf32> to vector<16x48xbf16>
    %c0_25 = arith.constant 0 : index
    %c0_26 = arith.constant 0 : index
    %70 = vector.load %arg3[%c0_25, %c0_26] : memref<48x64xbf16, #tpu.memory_space<vmem>>, vector<48x64xbf16>
    %cst_27 = arith.constant dense<0.000000e+00> : vector<16x64xf32>
    %71 = tpu.matmul %69, %70, %cst_27 {dimension_numbers = #tpu.dot_dimension_numbers<[1], [0], [0], [1], [0, 0, 1, 1], [], []>} : vector<16x48xbf16>, vector<48x64xbf16>, vector<16x64xf32> -> vector<16x64xf32>
    %c4 = arith.constant 4 : index
    %c0_28 = arith.constant 0 : index
    %72 = vector.load %arg5[%c4, %c0_28] : memref<8x128xf32, #tpu.memory_space<vmem>>, vector<1x64xf32>
    %c5 = arith.constant 5 : index
    %c0_29 = arith.constant 0 : index
    %73 = vector.load %arg5[%c5, %c0_29] : memref<8x128xf32, #tpu.memory_space<vmem>>, vector<1x64xf32>
    %cst_30 = arith.constant dense<0.000000e+00> : vector<64xf32>
    %74 = vector.multi_reduction <add>, %71, %cst_30 [0] : vector<16x64xf32> to vector<64xf32>
    %75 = vector.shape_cast %74 : vector<64xf32> to vector<1x64xf32>
    %76 = arith.mulf %71, %71 : vector<16x64xf32>
    %cst_31 = arith.constant dense<0.000000e+00> : vector<64xf32>
    %77 = vector.multi_reduction <add>, %76, %cst_31 [0] : vector<16x64xf32> to vector<64xf32>
    %78 = vector.shape_cast %77 : vector<64xf32> to vector<1x64xf32>
    %cst_32 = arith.constant 1.250000e-01 : f32
    %79 = vector.broadcast %cst_32 : f32 to vector<1x64xf32>
    %80 = arith.mulf %75, %79 : vector<1x64xf32>
    %cst_33 = arith.constant 1.250000e-01 : f32
    %81 = vector.broadcast %cst_33 : f32 to vector<1x64xf32>
    %82 = arith.mulf %78, %81 : vector<1x64xf32>
    %83 = arith.mulf %80, %80 : vector<1x64xf32>
    %84 = arith.subf %82, %83 : vector<1x64xf32>
    %cst_34 = arith.constant 0.000000e+00 : f32
    %85 = vector.broadcast %cst_34 : f32 to vector<1x64xf32>
    %86 = arith.maximumf %84, %85 : vector<1x64xf32>
    %cst_35 = arith.constant 9.99999974E-6 : f32
    %87 = vector.broadcast %cst_35 : f32 to vector<1x64xf32>
    %88 = arith.addf %86, %87 : vector<1x64xf32>
    %89 = math.rsqrt %88 : vector<1x64xf32>
    %90 = arith.mulf %72, %89 : vector<1x64xf32>
    %91 = arith.mulf %80, %90 : vector<1x64xf32>
    %92 = arith.subf %73, %91 : vector<1x64xf32>
    %93 = vector.broadcast %90 : vector<1x64xf32> to vector<16x64xf32>
    %94 = arith.mulf %71, %93 : vector<16x64xf32>
    %95 = vector.broadcast %92 : vector<1x64xf32> to vector<16x64xf32>
    %96 = arith.addf %94, %95 : vector<16x64xf32>
    %cst_36 = arith.constant 0.000000e+00 : f32
    %97 = vector.broadcast %cst_36 : f32 to vector<16x64xf32>
    %98 = arith.maximumf %96, %97 : vector<16x64xf32>
    %99 = vector.broadcast %4 : vector<16x1xf32> to vector<16x64xf32>
    %100 = arith.mulf %98, %99 : vector<16x64xf32>
    %101 = arith.truncf %100 : vector<16x64xf32> to vector<16x64xbf16>
    %c0_37 = arith.constant 0 : index
    %c0_38 = arith.constant 0 : index
    %102 = vector.load %arg4[%c0_37, %c0_38] : memref<64x128xbf16, #tpu.memory_space<vmem>>, vector<64x128xbf16>
    %cst_39 = arith.constant dense<0.000000e+00> : vector<16x128xf32>
    %103 = tpu.matmul %101, %102, %cst_39 {dimension_numbers = #tpu.dot_dimension_numbers<[1], [0], [0], [1], [0, 0, 1, 1], [], []>} : vector<16x64xbf16>, vector<64x128xbf16>, vector<16x128xf32> -> vector<16x128xf32>
    %c6 = arith.constant 6 : index
    %c0_40 = arith.constant 0 : index
    %104 = vector.load %arg5[%c6, %c0_40] : memref<8x128xf32, #tpu.memory_space<vmem>>, vector<1x128xf32>
    %105 = vector.broadcast %104 : vector<1x128xf32> to vector<16x128xf32>
    %106 = arith.addf %103, %105 : vector<16x128xf32>
    %c0_41 = arith.constant 0 : index
    %c0_42 = arith.constant 0 : index
    %107 = vector.load %arg6[%c0_41, %c0_42] : memref<16x128xf32, #tpu.memory_space<vmem>>, vector<16x128xf32>
    tpu.vector_store %arg6[%c0_41, %c0_42], %106 {strides = array<i32>} : memref<16x128xf32, #tpu.memory_space<vmem>>, vector<16x128xf32>,
    return
  }
}

</mosaic_0001>

<llo_original>
// kernel: tpu_custom_call.1
$region0: #{tpu_custom_call.1}
  #allocation0 [shape = 'u32[]', space=smem, size = 0x4, offset = 0x4, fixed_abs, tag = 'smem constant byte address 0x4 - core index']
  #allocation1 [shape = 'u32[144,128]{1,0:T(1,128)}', space=vmem, size = 0x12000, scoped, tag = 'internal scratch']
  %s0 = inlined_call_operand.hbm [shape: bf16[16,16], index: 0, kind: input, shape index: {}]
  %s1 = inlined_call_operand.hbm [shape: bf16[16,32], index: 1, kind: input, shape index: {}]
  %s2 = inlined_call_operand.hbm [shape: bf16[32,48], index: 2, kind: input, shape index: {}]
  %s3 = inlined_call_operand.hbm [shape: bf16[48,64], index: 3, kind: input, shape index: {}]
  %s4 = inlined_call_operand.hbm [shape: bf16[64,128], index: 4, kind: input, shape index: {}]
  %s5 = inlined_call_operand.vmem [shape: f32[8,128], index: 5, kind: input, shape index: {}]
  %s6 = inlined_call_operand.hbm [shape: f32[16,128], index: 6, kind: output, shape index: {}]
  %s7 = sld [smem:[#allocation0]]
  $region54: #{tpu_custom_call.1} parent=0
    _
  %s9 = ssub.s32 1, %s7
  %s10 = scalar_select 0, %s9, %s7
  $region1: #{tpu_custom_call.1} parent=0
    #allocation2 [shape = 'u8[4096]{0}', space=vmem, size = 0x1000, scoped, tag = 'input window, operand 0, single buffered']
    #allocation3 [shape = 's32[1]{0}', space=sflag, size = 0x4, scoped, tag = 'scoped memory for tpu_custom_call.1']
    #allocation4 [shape = 's32[1]{0}', space=sflag, size = 0x4, scoped, tag = 'scoped memory for tpu_custom_call.1']
    #allocation5 [shape = 'u8[4096]{0}', space=vmem, size = 0x1000, scoped, tag = 'input window, operand 1, single buffered']
    #allocation6 [shape = 's32[1]{0}', space=sflag, size = 0x4, scoped, tag = 'scoped memory for tpu_custom_call.1']
    #allocation7 [shape = 'u8[8192]{0}', space=vmem, size = 0x2000, scoped, tag = 'input window, operand 2, single buffered']
    #allocation8 [shape = 'u8[12288]{0}', space=vmem, size = 0x3000, scoped, tag = 'input window, operand 3, single buffered']
    #allocation9 [shape = 's32[1]{0}', space=sflag, size = 0x4, scoped, tag = 'scoped memory for tpu_custom_call.1']
    #allocation10 [shape = 'u8[16384]{0}', space=vmem, size = 0x4000, scoped, tag = 'input window, operand 4, single buffered']
    #allocation11 [shape = 'u8[8192]{0}', space=vmem, size = 0x2000, scoped, tag = 'output window, operand 0, single buffered']
    %11 = vsyncpa [#allocation3], 0
    %12 = vsyncpa [#allocation6], 0
    %13 = vsyncpa [#allocation9], 0
    %14 = vsyncpa [#allocation4], 0
    // Predicated region
    $region2: #{tpu_custom_call.1} parent=1 // pred_check
      _
    $region3: #{tpu_custom_call.1} parent=1 // pred_check_branch
      %16 = sbr.rel (0) target = $region5
    $region4: #{tpu_custom_call.1} parent=1 // pred_region
      %s18 = ssub.s32 128, 128
      %19 = vsyncadd [#allocation3], %s18
      %s20 = sshll.u32 [#allocation2], 4
      %s21 = int_to_ptr.vmem [resolvable:$true] %s20
      %26 = dma.hbm_to_vmem [thread:$0]  %s0, 128, %s21, [#allocation3], 64, 64, 4
    $region5: #{tpu_custom_call.1} parent=1 // pred_fallthru
      _
    // Predicated region
    $region6: #{tpu_custom_call.1} parent=1 // pred_check
      _
    $region7: #{tpu_custom_call.1} parent=1 // pred_check_branch
      %28 = sbr.rel (0) target = $region9
    $region8: #{tpu_custom_call.1} parent=1 // pred_region
      %s30 = ssub.s32 128, 128
      %31 = vsyncadd [#allocation6], %s30
      %s32 = sshll.u32 [#allocation5], 4
      %s33 = int_to_ptr.vmem [resolvable:$true] %s32
      %38 = dma.hbm_to_vmem [thread:$0]  %s1, 128, %s33, [#allocation6], 64, 64, 4
    $region9: #{tpu_custom_call.1} parent=1 // pred_fallthru
      _
    // Predicated region
    $region10: #{tpu_custom_call.1} parent=1 // pred_check
      _
    $region11: #{tpu_custom_call.1} parent=1 // pred_check_branch
      %40 = sbr.rel (0) target = $region13
    $region12: #{tpu_custom_call.1} parent=1 // pred_region
      %s42 = ssub.s32 256, 256
      %43 = vsyncadd [#allocation6], %s42
      %s44 = sshll.u32 [#allocation7], 4
      %s45 = int_to_ptr.vmem [resolvable:$true] %s44
      %50 = dma.hbm_to_vmem [thread:$0]  %s2, 256, %s45, [#allocation6], 64, 64, 4
    $region13: #{tpu_custom_call.1} parent=1 // pred_fallthru
      _
    // Predicated region
    $region14: #{tpu_custom_call.1} parent=1 // pred_check
      _
    $region15: #{tpu_custom_call.1} parent=1 // pred_check_branch
      %52 = sbr.rel (0) target = $region17
    $region16: #{tpu_custom_call.1} parent=1 // pred_region
      %s54 = ssub.s32 384, 384
      %55 = vsyncadd [#allocation9], %s54
      %s56 = sshll.u32 [#allocation8], 4
      %s57 = int_to_ptr.vmem [resolvable:$true] %s56
      %62 = dma.hbm_to_vmem [thread:$0]  %s3, 384, %s57, [#allocation9], 64, 64, 4
    $region17: #{tpu_custom_call.1} parent=1 // pred_fallthru
      _
    // Predicated region
    $region18: #{tpu_custom_call.1} parent=1 // pred_check
      _
    $region19: #{tpu_custom_call.1} parent=1 // pred_check_branch
      %64 = sbr.rel (0) target = $region21
    $region20: #{tpu_custom_call.1} parent=1 // pred_region
      %s66 = ssub.s32 512, 512
      %67 = vsyncadd [#allocation9], %s66
      %s68 = sshll.u32 [#allocation10], 4
      %s69 = int_to_ptr.vmem [resolvable:$true] %s68
      %74 = dma.hbm_to_vmem [thread:$0]  %s4, 512, %s69, [#allocation9], 64, 64, 4
    $region21: #{tpu_custom_call.1} parent=1 // pred_fallthru
      _
    // Predicated region
    $region22: #{tpu_custom_call.1} parent=1 // pred_check
      _
    $region23: #{tpu_custom_call.1} parent=1 // pred_check_branch
      %76 = sbr.rel (0) target = $region25
    $region24: #{tpu_custom_call.1} parent=1 // pred_region
      _
    $region25: #{tpu_custom_call.1} parent=1 // pred_fallthru
      _
    // Predicated region
    $region26: #{tpu_custom_call.1} parent=1 // pred_check
      _
    $region27: #{tpu_custom_call.1} parent=1 // pred_check_branch
      %78 = sbr.rel (0) target = $region29
    $region28: #{tpu_custom_call.1} parent=1 // pred_region
      %79 = dma.done [#allocation3], 128
    $region29: #{tpu_custom_call.1} parent=1 // pred_fallthru
      _
    // Predicated region
    $region30: #{tpu_custom_call.1} parent=1 // pred_check
      _
    $region31: #{tpu_custom_call.1} parent=1 // pred_check_branch
      %81 = sbr.rel (0) target = $region33
    $region32: #{tpu_custom_call.1} parent=1 // pred_region
      %82 = dma.done [#allocation6], 128
    $region33: #{tpu_custom_call.1} parent=1 // pred_fallthru
      _
    // Predicated region
    $region34: #{tpu_custom_call.1} parent=1 // pred_check
      _
    $region35: #{tpu_custom_call.1} parent=1 // pred_check_branch
      %84 = sbr.rel (0) target = $region37
    $region36: #{tpu_custom_call.1} parent=1 // pred_region
      %85 = dma.done [#allocation6], 256
    $region37: #{tpu_custom_call.1} parent=1 // pred_fallthru
      _
    // Predicated region
    $region38: #{tpu_custom_call.1} parent=1 // pred_check
      _
    $region39: #{tpu_custom_call.1} parent=1 // pred_check_branch
      %87 = sbr.rel (0) target = $region41
    $region40: #{tpu_custom_call.1} parent=1 // pred_region
      %88 = dma.done [#allocation9], 384
    $region41: #{tpu_custom_call.1} parent=1 // pred_fallthru
      _
    // Predicated region
    $region42: #{tpu_custom_call.1} parent=1 // pred_check
      _
    $region43: #{tpu_custom_call.1} parent=1 // pred_check_branch
      %90 = sbr.rel (0) target = $region45
    $region44: #{tpu_custom_call.1} parent=1 // pred_region
      %91 = dma.done [#allocation9], 512
    $region45: #{tpu_custom_call.1} parent=1 // pred_fallthru
      _
    %v93 = vlaneseq
    %v94 = vshrl.u32 %v93, 7
    %v95 = vadd.s32 %v94, 8
    %vm96 = vcmp.lt.s32.totalorder %v94, 8
    %vm97 = vcmp.lt.s32.totalorder %v95, 8
    %v98 = vsel %vm96, 1, 0
    %v99 = vsel %vm97, 1, 0
    %v100 = vcvt.s32.f32 %v98
    %v101 = vcvt.s32.f32 %v99
    %v102 = vld [vmem:[#allocation2] sm:$0xf]
    %v103 = vld [vmem:[#allocation2 + $0x4] sm:$0xf]
    %v104 = vld [vmem:[#allocation5] sm:$0xf]
    %v105 = vld [vmem:[#allocation5 + $0x4] sm:$0xf]
    %v108 = vunpack.c.l.b16 %v102
    %v109 = vunpack.c.l.b16 %v103
    %v110 = vpack.c.b16 %v109, %v108
    %v113 = vunpack.c.l.b16 %v104
    %v114 = vunpack.c.l.b16 %v105
    %v115 = vpack.c.b16 %v114, %v113
    %vm117 = vcmask 130048
    %v119 = vsel %vm117, %v110, 0
    %121 = vmatprep.subr.bf16.mxu0 0
    %122 = vmatpush1.bf16.msra.mxu0 0
    %123 = vmatprep.subr.bf16.mxu0 0
    %124 = vmatpush1.bf16.msra.mxu0 0
    %125 = vmatprep.subr.bf16.mxu0 0
    %126 = vmatpush1.bf16.msra.mxu0 0
    %127 = vmatprep.subr.bf16.mxu0 0
    %128 = vmatpush1.bf16.msra.mxu0 0
    %129 = vmatprep.subr.bf16.mxu0 0
    %130 = vmatpush1.bf16.msra.mxu0 0
    %131 = vmatprep.subr.bf16.mxu0 0
    %132 = vmatpush1.bf16.msra.mxu0 0
    %133 = vmatprep.subr.bf16.mxu0 0
    %134 = vmatpush1.bf16.msra.mxu0 0
    %135 = vmatprep.subr.bf16.mxu0 0
    %136 = vmatpush1.bf16.msra.mxu0 %v115
    %137 = vmatprep.subr.bf16.mxu0 0
    %138 = vmatpush2.bf16.msra.mxu0 0
    %139 = vmatprep.subr.bf16.mxu0 0
    %140 = vmatpush2.bf16.msra.mxu0 0
    %141 = vmatprep.subr.bf16.mxu0 0
    %142 = vmatpush2.bf16.msra.mxu0 0
    %143 = vmatprep.subr.bf16.mxu0 0
    %144 = vmatpush2.bf16.msra.mxu0 0
    %145 = vmatprep.subr.bf16.mxu0 0
    %146 = vmatpush2.bf16.msra.mxu0 0
    %147 = vmatprep.subr.bf16.mxu0 0
    %148 = vmatpush2.bf16.msra.mxu0 0
    %149 = vmatprep.subr.bf16.mxu0 0
    %150 = vmatpush2.bf16.msra.mxu0 0
    %151 = vmatprep.subr.bf16.mxu0 0
    %152 = vmatpush2.bf16.msra.mxu0 0
    %153 = vmatprep.mubr.bf16.mxu0 0
    %154 = vmatmul.mubr.bf16.gmra.mxu0 %v119
    %v155 = vpop.f32.mrf.mxu0
    %v156 = vadd.f32 0.0, %v155
    %v157 = vpop.f32.mrf.mxu0
    %v158 = vpop.f32.mrf.mxu0
    %v159 = vadd.f32 0.0, %v158
    %v160 = vpop.f32.mrf.mxu0
    %161 = vdwg.mxu0
    %v162 = vld [vmem:[%s5] sm:$0x1]
    %v163 = vld [vmem:[%s5 + $0x1] sm:$0x1]
    %vm164 = vcmask 261120
    %v165 = vsel %vm164, %v156, 0.0
    %v166 = vsel %vm164, %v159, 0.0
    %v167 = vadd.f32 %v165, %v166
    %v168 = vrot.slane %v167, 4
    %v169 = vadd.f32 %v167, %v168
    %v170 = vrot.slane %v169, 2
    %v171 = vadd.f32 %v169, %v170
    %v172 = vrot.slane %v171, 1
    %v173 = vadd.f32 %v171, %v172
    %v174 = vmul.f32 %v156, %v156
    %v175 = vmul.f32 %v159, %v159
    %v176 = vsel %vm164, %v174, 0.0
    %v177 = vsel %vm164, %v175, 0.0
    %v178 = vadd.f32 %v176, %v177
    %v179 = vrot.slane %v178, 4
    %v180 = vadd.f32 %v178, %v179
    %v181 = vrot.slane %v180, 2
    %v182 = vadd.f32 %v180, %v181
    %v183 = vrot.slane %v182, 1
    %v184 = vadd.f32 %v182, %v183
    %v185 = vmul.f32 %v173, 0.125
    %v186 = vmul.f32 %v184, 0.125
    %v187 = vmul.f32 %v185, %v185
    %v188 = vsub.f32 %v186, %v187
    %v189 = vmax.f32 %v188, 0.0
    %v190 = vadd.f32 %v189, 1e-05
    %v191 = vrsqrt.pop %v190
    %v192 = vmul.f32 %v162, %v191
    %v193 = vmul.f32 %v185, %v192
    %v194 = vsub.f32 %v163, %v193
    %v195 = vlaneseq
    %v196 = vshrl.u32 %v195, 7
    %v197 = vsub.s32 0, %v196
    %v198 = vrot.slane %v192, %v197
    %v199 = vmul.f32 %v156, %v198
    %v200 = vmul.f32 %v159, %v198
    %v201 = vlaneseq
    %v202 = vshrl.u32 %v201, 7
    %v203 = vsub.s32 0, %v202
    %v204 = vrot.slane %v194, %v203
    %v205 = vadd.f32 %v199, %v204
    %v206 = vadd.f32 %v200, %v204
    %v207 = vmax.f32 %v205, 0.0
    %v208 = vmax.f32 %v206, 0.0
    %v209 = vmul.f32 %v207, %v100
    %v210 = vmul.f32 %v208, %v101
    %v211 = vpack.c.bf16 %v210, %v209
    %v212 = vld [vmem:[#allocation7] sm:$0xf]
    %v213 = vld [vmem:[#allocation7 + $0x4] sm:$0xf]
    %v214 = vld [vmem:[#allocation7 + $0x8] sm:$0xf]
    %v215 = vld [vmem:[#allocation7 + $0xc] sm:$0xf]
    %v220 = vunpack.c.l.b16 %v212
    %v221 = vunpack.c.l.b16 %v213
    %v222 = vunpack.c.l.b16 %v214
    %v223 = vunpack.c.l.b16 %v215
    %v224 = vpack.c.b16 %v221, %v220
    %v225 = vpack.c.b16 %v223, %v222
    %v229 = vsel %vm164, %v211, 0
    %231 = vmatprep.subr.bf16.mxu0 0
    %232 = vmatpush1.bf16.msra.mxu0 0
    %233 = vmatprep.subr.bf16.mxu0 0
    %234 = vmatpush1.bf16.msra.mxu0 0
    %235 = vmatprep.subr.bf16.mxu0 0
    %236 = vmatpush1.bf16.msra.mxu0 0
    %237 = vmatprep.subr.bf16.mxu0 0
    %238 = vmatpush1.bf16.msra.mxu0 0
    %239 = vmatprep.subr.bf16.mxu0 0
    %240 = vmatpush1.bf16.msra.mxu0 0
    %241 = vmatprep.subr.bf16.mxu0 0
    %242 = vmatpush1.bf16.msra.mxu0 0
    %243 = vmatprep.subr.bf16.mxu0 0
    %244 = vmatpush1.bf16.msra.mxu0 %v225
    %245 = vmatprep.subr.bf16.mxu0 0
    %246 = vmatpush1.bf16.msra.mxu0 %v224
    %247 = vmatprep.subr.bf16.mxu0 0
    %248 = vmatpush2.bf16.msra.mxu0 0
    %249 = vmatprep.subr.bf16.mxu0 0
    %250 = vmatpush2.bf16.msra.mxu0 0
    %251 = vmatprep.subr.bf16.mxu0 0
    %252 = vmatpush2.bf16.msra.mxu0 0
    %253 = vmatprep.subr.bf16.mxu0 0
    %254 = vmatpush2.bf16.msra.mxu0 0
    %255 = vmatprep.subr.bf16.mxu0 0
    %256 = vmatpush2.bf16.msra.mxu0 0
    %257 = vmatprep.subr.bf16.mxu0 0
    %258 = vmatpush2.bf16.msra.mxu0 0
    %259 = vmatprep.subr.bf16.mxu0 0
    %260 = vmatpush2.bf16.msra.mxu0 0
    %261 = vmatprep.subr.bf16.mxu0 0
    %262 = vmatpush2.bf16.msra.mxu0 0
    %263 = vmatprep.mubr.bf16.mxu0 0
    %264 = vmatmul.mubr.bf16.gmra.mxu0 %v229
    %v265 = vpop.f32.mrf.mxu0
    %v266 = vadd.f32 0.0, %v265
    %v267 = vpop.f32.mrf.mxu0
    %v268 = vpop.f32.mrf.mxu0
    %v269 = vadd.f32 0.0, %v268
    %v270 = vpop.f32.mrf.mxu0
    %271 = vdwg.mxu0
    %v272 = vld [vmem:[%s5 + $0x2] sm:$0x1]
    %v273 = vld [vmem:[%s5 + $0x3] sm:$0x1]
    %vm274 = vcmask 392192
    %v275 = vsel %vm274, %v266, 0.0
    %v276 = vsel %vm274, %v269, 0.0
    %v277 = vadd.f32 %v275, %v276
    %v278 = vrot.slane %v277, 4
    %v279 = vadd.f32 %v277, %v278
    %v280 = vrot.slane %v279, 2
    %v281 = vadd.f32 %v279, %v280
    %v282 = vrot.slane %v281, 1
    %v283 = vadd.f32 %v281, %v282
    %v284 = vmul.f32 %v266, %v266
    %v285 = vmul.f32 %v269, %v269
    %v286 = vsel %vm274, %v284, 0.0
    %v287 = vsel %vm274, %v285, 0.0
    %v288 = vadd.f32 %v286, %v287
    %v289 = vrot.slane %v288, 4
    %v290 = vadd.f32 %v288, %v289
    %v291 = vrot.slane %v290, 2
    %v292 = vadd.f32 %v290, %v291
    %v293 = vrot.slane %v292, 1
    %v294 = vadd.f32 %v292, %v293
    %v295 = vmul.f32 %v283, 0.125
    %v296 = vmul.f32 %v294, 0.125
    %v297 = vmul.f32 %v295, %v295
    %v298 = vsub.f32 %v296, %v297
    %v299 = vmax.f32 %v298, 0.0
    %v300 = vadd.f32 %v299, 1e-05
    %v301 = vrsqrt.pop %v300
    %v302 = vmul.f32 %v272, %v301
    %v303 = vmul.f32 %v295, %v302
    %v304 = vsub.f32 %v273, %v303
    %v305 = vlaneseq
    %v306 = vshrl.u32 %v305, 7
    %v307 = vsub.s32 0, %v306
    %v308 = vrot.slane %v302, %v307
    %v309 = vmul.f32 %v266, %v308
    %v310 = vmul.f32 %v269, %v308
    %v311 = vlaneseq
    %v312 = vshrl.u32 %v311, 7
    %v313 = vsub.s32 0, %v312
    %v314 = vrot.slane %v304, %v313
    %v315 = vadd.f32 %v309, %v314
    %v316 = vadd.f32 %v310, %v314
    %v317 = vmax.f32 %v315, 0.0
    %v318 = vmax.f32 %v316, 0.0
    %v319 = vmul.f32 %v317, %v100
    %v320 = vmul.f32 %v318, %v101
    %v321 = vpack.c.bf16 %v320, %v319
    %v322 = vld [vmem:[#allocation8] sm:$0xf]
    %v323 = vld [vmem:[#allocation8 + $0x4] sm:$0xf]
    %v324 = vld [vmem:[#allocation8 + $0x8] sm:$0xf]
    %v325 = vld [vmem:[#allocation8 + $0xc] sm:$0xf]
    %v326 = vld [vmem:[#allocation8 + $0x10] sm:$0xf]
    %v327 = vld [vmem:[#allocation8 + $0x14] sm:$0xf]
    %v334 = vunpack.c.l.b16 %v322
    %v335 = vunpack.c.l.b16 %v323
    %v336 = vunpack.c.l.b16 %v324
    %v337 = vunpack.c.l.b16 %v325
    %v338 = vunpack.c.l.b16 %v326
    %v339 = vunpack.c.l.b16 %v327
    %v340 = vpack.c.b16 %v335, %v334
    %v341 = vpack.c.b16 %v337, %v336
    %v342 = vpack.c.b16 %v339, %v338
    %v347 = vsel %vm274, %v321, 0
    %349 = vmatprep.subr.bf16.mxu0 0
    %350 = vmatpush1.bf16.msra.mxu0 0
    %351 = vmatprep.subr.bf16.mxu0 0
    %352 = vmatpush1.bf16.msra.mxu0 0
    %353 = vmatprep.subr.bf16.mxu0 0
    %354 = vmatpush1.bf16.msra.mxu0 0
    %355 = vmatprep.subr.bf16.mxu0 0
    %356 = vmatpush1.bf16.msra.mxu0 0
    %357 = vmatprep.subr.bf16.mxu0 0
    %358 = vmatpush1.bf16.msra.mxu0 0
    %359 = vmatprep.subr.bf16.mxu0 0
    %360 = vmatpush1.bf16.msra.mxu0 %v342
    %361 = vmatprep.subr.bf16.mxu0 0
    %362 = vmatpush1.bf16.msra.mxu0 %v341
    %363 = vmatprep.subr.bf16.mxu0 0
    %364 = vmatpush1.bf16.msra.mxu0 %v340
    %365 = vmatprep.subr.bf16.mxu0 0
    %366 = vmatpush2.bf16.msra.mxu0 0
    %367 = vmatprep.subr.bf16.mxu0 0
    %368 = vmatpush2.bf16.msra.mxu0 0
    %369 = vmatprep.subr.bf16.mxu0 0
    %370 = vmatpush2.bf16.msra.mxu0 0
    %371 = vmatprep.subr.bf16.mxu0 0
    %372 = vmatpush2.bf16.msra.mxu0 0
    %373 = vmatprep.subr.bf16.mxu0 0
    %374 = vmatpush2.bf16.msra.mxu0 0
    %375 = vmatprep.subr.bf16.mxu0 0
    %376 = vmatpush2.bf16.msra.mxu0 0
    %377 = vmatprep.subr.bf16.mxu0 0
    %378 = vmatpush2.bf16.msra.mxu0 0
    %379 = vmatprep.subr.bf16.mxu0 0
    %380 = vmatpush2.bf16.msra.mxu0 0
    %381 = vmatprep.mubr.bf16.mxu0 0
    %382 = vmatmul.mubr.bf16.gmra.mxu0 %v347
    %v383 = vpop.f32.mrf.mxu0
    %v384 = vadd.f32 0.0, %v383
    %v385 = vpop.f32.mrf.mxu0
    %v386 = vpop.f32.mrf.mxu0
    %v387 = vadd.f32 0.0, %v386
    %v388 = vpop.f32.mrf.mxu0
    %389 = vdwg.mxu0
    %v390 = vld [vmem:[%s5 + $0x4] sm:$0x1]
    %v391 = vld [vmem:[%s5 + $0x5] sm:$0x1]
    %vm392 = vcmask 523264
    %v393 = vsel %vm392, %v384, 0.0
    %v394 = vsel %vm392, %v387, 0.0
    %v395 = vadd.f32 %v393, %v394
    %v396 = vrot.slane %v395, 4
    %v397 = vadd.f32 %v395, %v396
    %v398 = vrot.slane %v397, 2
    %v399 = vadd.f32 %v397, %v398
    %v400 = vrot.slane %v399, 1
    %v401 = vadd.f32 %v399, %v400
    %v402 = vmul.f32 %v384, %v384
    %v403 = vmul.f32 %v387, %v387
    %v404 = vsel %vm392, %v402, 0.0
    %v405 = vsel %vm392, %v403, 0.0
    %v406 = vadd.f32 %v404, %v405
    %v407 = vrot.slane %v406, 4
    %v408 = vadd.f32 %v406, %v407
    %v409 = vrot.slane %v408, 2
    %v410 = vadd.f32 %v408, %v409
    %v411 = vrot.slane %v410, 1
    %v412 = vadd.f32 %v410, %v411
    %v413 = vmul.f32 %v401, 0.125
    %v414 = vmul.f32 %v412, 0.125
    %v415 = vmul.f32 %v413, %v413
    %v416 = vsub.f32 %v414, %v415
    %v417 = vmax.f32 %v416, 0.0
    %v418 = vadd.f32 %v417, 1e-05
    %v419 = vrsqrt.pop %v418
    %v420 = vmul.f32 %v390, %v419
    %v421 = vmul.f32 %v413, %v420
    %v422 = vsub.f32 %v391, %v421
    %v423 = vlaneseq
    %v424 = vshrl.u32 %v423, 7
    %v425 = vsub.s32 0, %v424
    %v426 = vrot.slane %v420, %v425
    %v427 = vmul.f32 %v384, %v426
    %v428 = vmul.f32 %v387, %v426
    %v429 = vlaneseq
    %v430 = vshrl.u32 %v429, 7
    %v431 = vsub.s32 0, %v430
    %v432 = vrot.slane %v422, %v431
    %v433 = vadd.f32 %v427, %v432
    %v434 = vadd.f32 %v428, %v432
    %v435 = vmax.f32 %v433, 0.0
    %v436 = vmax.f32 %v434, 0.0
    %v437 = vmul.f32 %v435, %v100
    %v438 = vmul.f32 %v436, %v101
    %v439 = vpack.c.bf16 %v438, %v437
    %v440 = vld [vmem:[#allocation10] sm:$0xf]
    %v441 = vld [vmem:[#allocation10 + $0x4] sm:$0xf]
    %v442 = vld [vmem:[#allocation10 + $0x8] sm:$0xf]
    %v443 = vld [vmem:[#allocation10 + $0xc] sm:$0xf]
    %v444 = vld [vmem:[#allocation10 + $0x10] sm:$0xf]
    %v445 = vld [vmem:[#allocation10 + $0x14] sm:$0xf]
    %v446 = vld [vmem:[#allocation10 + $0x18] sm:$0xf]
    %v447 = vld [vmem:[#allocation10 + $0x1c] sm:$0xf]
    %v448 = vld [vmem:[%s5 + $0x6] sm:$0x1]
    %v449 = vlaneseq
    %v450 = vshrl.u32 %v449, 7
    %v451 = vsub.s32 0, %v450
    %v452 = vrot.slane %v448, %v451
    %v461 = vunpack.c.l.b16 %v440
    %v462 = vunpack.c.l.b16 %v441
    %v463 = vunpack.c.l.b16 %v442
    %v464 = vunpack.c.l.b16 %v443
    %v465 = vunpack.c.l.b16 %v444
    %v466 = vunpack.c.l.b16 %v445
    %v467 = vunpack.c.l.b16 %v446
    %v468 = vunpack.c.l.b16 %v447
    %v469 = vpack.c.b16 %v462, %v461
    %v470 = vpack.c.b16 %v464, %v463
    %v471 = vpack.c.b16 %v466, %v465
    %v472 = vpack.c.b16 %v468, %v467
    %v478 = vsel %vm392, %v439, 0
    %480 = vmatprep.subr.bf16.mxu0 0
    %481 = vmatpush1.bf16.msra.mxu0 0
    %482 = vmatprep.subr.bf16.mxu0 0
    %483 = vmatpush1.bf16.msra.mxu0 0
    %484 = vmatprep.subr.bf16.mxu0 0
    %485 = vmatpush1.bf16.msra.mxu0 0
    %486 = vmatprep.subr.bf16.mxu0 0
    %487 = vmatpush1.bf16.msra.mxu0 0
    %488 = vmatprep.subr.bf16.mxu0 0
    %489 = vmatpush1.bf16.msra.mxu0 %v472
    %490 = vmatprep.subr.bf16.mxu0 0
    %491 = vmatpush1.bf16.msra.mxu0 %v471
    %492 = vmatprep.subr.bf16.mxu0 0
    %493 = vmatpush1.bf16.msra.mxu0 %v470
    %494 = vmatprep.subr.bf16.mxu0 0
    %495 = vmatpush1.bf16.msra.mxu0 %v469
    %496 = vmatprep.subr.bf16.mxu0 0
    %497 = vmatpush2.bf16.msra.mxu0 0
    %498 = vmatprep.subr.bf16.mxu0 0
    %499 = vmatpush2.bf16.msra.mxu0 0
    %500 = vmatprep.subr.bf16.mxu0 0
    %501 = vmatpush2.bf16.msra.mxu0 0
    %502 = vmatprep.subr.bf16.mxu0 0
    %503 = vmatpush2.bf16.msra.mxu0 0
    %504 = vmatprep.subr.bf16.mxu0 0
    %505 = vmatpush2.bf16.msra.mxu0 0
    %506 = vmatprep.subr.bf16.mxu0 0
    %507 = vmatpush2.bf16.msra.mxu0 0
    %508 = vmatprep.subr.bf16.mxu0 0
    %509 = vmatpush2.bf16.msra.mxu0 0
    %510 = vmatprep.subr.bf16.mxu0 0
    %511 = vmatpush2.bf16.msra.mxu0 0
    %512 = vmatprep.mubr.bf16.mxu0 0
    %513 = vmatmul.mubr.bf16.gmra.mxu0 %v478
    %v514 = vpop.f32.mrf.mxu0
    %v515 = vadd.f32 %v452, %v514
    %v516 = vpop.f32.mrf.mxu0
    %v517 = vpop.f32.mrf.mxu0
    %v518 = vadd.f32 %v452, %v517
    %v519 = vpop.f32.mrf.mxu0
    %520 = vdwg.mxu0
    %521 = vst [vmem:[#allocation11] sm:$0xff] %v515
    %522 = vst [vmem:[#allocation11 + $0x8] sm:$0xff] %v518
    // Predicated region
    $region46: #{tpu_custom_call.1} parent=1 // pred_check
      _
    $region47: #{tpu_custom_call.1} parent=1 // pred_check_branch
      %524 = sbr.rel (0) target = $region49
    $region48: #{tpu_custom_call.1} parent=1 // pred_region
      %s526 = ssub.s32 256, 256
      %527 = vsyncadd [#allocation4], %s526
      %s528 = sshll.u32 [#allocation11], 4
      %s529 = int_to_ptr.vmem [resolvable:$true] %s528
      %534 = dma.vmem_to_hbm [thread:$0]  %s529, 256, %s6, [#allocation4], 128, 128, 8
    $region49: #{tpu_custom_call.1} parent=1 // pred_fallthru
      _
    // Predicated region
    $region50: #{tpu_custom_call.1} parent=1 // pred_check
      _
    $region51: #{tpu_custom_call.1} parent=1 // pred_check_branch
      %536 = sbr.rel (0) target = $region53
    $region52: #{tpu_custom_call.1} parent=1 // pred_region
      %537 = dma.done [#allocation4], 256
    $region53: #{tpu_custom_call.1} parent=1 // pred_fallthru
      _
    %538 = vsyncpa [#allocation3], 1
    %539 = vsyncpa [#allocation6], 1
    %540 = vsyncpa [#allocation9], 1
    %541 = vsyncpa [#allocation4], 1

</llo_original>
